<compile_context>
chip_gen: v7x
topology: tpu7x:2x2x1
jax: 0.10.0
libtpu: 0.0.40
codegen_flags: <defaults>
</compile_context>

<pallas_src>
import math

import jax
import jax.numpy as jnp
from jax import lax
from jax.experimental import pallas as pl
from jax.experimental.pallas import tpu as pltpu


_VMEM_BUDGET = 44 * 1024 * 1024   # resident-weight budget (fits v7x 64 MiB/TC)
_VMEM_LIMIT = 48 * 1024 * 1024    # scoped-VMEM limit passed to Mosaic


def _round_up(x, m):
    return -(-x // m) * m


def _pick_tile(dim, candidates):
    """Largest candidate that evenly divides dim, else the full dim."""
    for c in candidates:
        if c <= dim and dim % c == 0:
            return c
    return dim


def _make_fused_kernel(no_imgnorm: bool, use_abs: bool):
    """Weight-resident kernel: full [K, N] weight lives in VMEM, one dot per
    row block, bias + l2norm + abs fused in the same step."""

    def kernel(x_ref, w_ref, b_ref, o_ref):
        feats = jnp.dot(x_ref[...], w_ref[...],
                        preferred_element_type=jnp.float32)
        feats = feats + b_ref[...].astype(jnp.float32)
        if not no_imgnorm:
            sq = jnp.sum(feats * feats, axis=1, keepdims=True)
            feats = feats * lax.rsqrt(sq)
        if use_abs:
            feats = jnp.abs(feats)
        o_ref[...] = feats.astype(o_ref.dtype)

    return kernel


def _make_streaming_kernel(no_imgnorm: bool, use_abs: bool):
    """Fallback for huge weights: stream K, accumulate in f32 VMEM scratch."""

    def kernel(x_ref, w_ref, b_ref, o_ref, acc_ref):
        k = pl.program_id(1)

        @pl.when(k == 0)
        def _init():
            acc_ref[...] = jnp.zeros_like(acc_ref)

        # x block: (TM, TK); w block: (TK, N) -- standard (1,0) contraction on
        # the pre-transposed weight, no in-kernel transpose.
        acc_ref[...] += jnp.dot(x_ref[...], w_ref[...],
                                preferred_element_type=jnp.float32)

        @pl.when(k == pl.num_programs(1) - 1)
        def _finalize():
            feats = acc_ref[...] + b_ref[...].astype(jnp.float32)
            if not no_imgnorm:
                sq = jnp.sum(feats * feats, axis=1, keepdims=True)
                feats = feats * lax.rsqrt(sq)
            if use_abs:
                feats = jnp.abs(feats)
            o_ref[...] = feats.astype(o_ref.dtype)

    return kernel


def encoder_image_precomp(images, weight, bias, *, no_imgnorm=False,
                          use_abs=False, compute_dtype=None):
    """Pallas implementation of EncoderImagePrecomp.forward.

    images: [B, img_dim]; weight: [embed_size, img_dim] (PyTorch Linear layout);
    bias: [embed_size].  Returns [B, embed_size].
    """
    B, K = images.shape
    N, K2 = weight.shape
    assert K == K2 and bias.shape == (N,)
    out_dtype = images.dtype

    # One-time transpose of the static parameter to [K, N]; XLA folds this,
    # and the kernel then never pays a per-step vxpose on the RHS.
    w_t = jnp.transpose(weight)
    x_in = images
    if compute_dtype is not None:
        # Optional bf16 matmul operands on v6e/v7x; accumulation stays f32.
        w_t = w_t.astype(compute_dtype)
        x_in = x_in.astype(compute_dtype)

    itemsize = jnp.dtype(x_in.dtype).itemsize
    out_itemsize = jnp.dtype(out_dtype).itemsize

    # Large row tiles (multiples of 256 feed the v6e/v7x 256x256 MXU fully,
    # and are also 128-aligned for v5e).  Pad the batch to a tile multiple so
    # no block is ragged; padded rows are sliced off after the call.
    b8 = max(8, _round_up(B, 8))
    tm = 8
    for c in (512, 256, 128, 64, 32, 16, 8):
        if c <= b8:
            tm = c
            break
    Bp = _round_up(B, tm)
    if Bp != B:
        x_in = jnp.pad(x_in, ((0, Bp - B), (0, 0)))

    bias2d = bias.reshape(1, N)

    # Can the whole weight stay VMEM-resident (counting double buffering and
    # the per-step image/output tiles)?
    resident_vmem = (2 * K * N * itemsize          # weight (double-buffered)
                     + 2 * tm * K * itemsize       # image row tiles
                     + 2 * tm * N * out_itemsize   # output tiles
                     + 2 * N * 4)                  # bias
    resident = resident_vmem <= _VMEM_BUDGET

    if resident:
        out = pl.pallas_call(
            _make_fused_kernel(bool(no_imgnorm), bool(use_abs)),
            out_shape=jax.ShapeDtypeStruct((Bp, N), out_dtype),
            grid_spec=pltpu.PrefetchScalarGridSpec(
                num_scalar_prefetch=0,
                grid=(Bp // tm,),
                in_specs=[
                    pl.BlockSpec((tm, K), lambda i: (i, 0)),   # image rows
                    pl.BlockSpec((K, N), lambda i: (0, 0)),    # resident weight
                    pl.BlockSpec((1, N), lambda i: (0, 0)),    # bias
                ],
                out_specs=pl.BlockSpec((tm, N), lambda i: (i, 0)),
            ),
            compiler_params=pltpu.CompilerParams(
                dimension_semantics=("parallel",),
                vmem_limit_bytes=_VMEM_LIMIT,
            ),
        )(x_in, w_t, bias2d)
    else:
        # Streaming fallback: reduce over K with an f32 accumulator.
        tk = _pick_tile(K, (2048, 1024, 512, 256, 128))
        out = pl.pallas_call(
            _make_streaming_kernel(bool(no_imgnorm), bool(use_abs)),
            out_shape=jax.ShapeDtypeStruct((Bp, N), out_dtype),
            grid_spec=pltpu.PrefetchScalarGridSpec(
                num_scalar_prefetch=0,
                grid=(Bp // tm, K // tk),
                in_specs=[
                    pl.BlockSpec((tm, tk), lambda i, k: (i, k)),  # image tile
                    pl.BlockSpec((tk, N), lambda i, k: (k, 0)),   # weight tile
                    pl.BlockSpec((1, N), lambda i, k: (0, 0)),    # bias
                ],
                out_specs=pl.BlockSpec((tm, N), lambda i, k: (i, 0)),
                scratch_shapes=[pltpu.VMEM((tm, N), jnp.float32)],
            ),
            compiler_params=pltpu.CompilerParams(
                dimension_semantics=("parallel", "arbitrary"),
                vmem_limit_bytes=_VMEM_LIMIT,
            ),
        )(x_in, w_t, bias2d)

    if Bp != B:
        out = out[:B]
    return out


def _reference(images, weight, bias, *, no_imgnorm=False, use_abs=False):
    """Pure-JAX reference mirroring the PyTorch forward (fc -> l2norm -> abs)."""
    feats = images @ weight.T + bias
    if not no_imgnorm:
        norm = jnp.sqrt(jnp.sum(feats * feats, axis=1, keepdims=True))
        feats = feats / norm
    if use_abs:
        feats = jnp.abs(feats)
    return feats


if __name__ == "__main__":
    key = jax.random.PRNGKey(0)
    kx, kw = jax.random.split(key)

    # Small demo shapes consistent with the module: batch=10 precomputed image
    # features of dim 64, projected to embed_size=32 (non-multiple-of-8 batch
    # exercises the padding path).
    B, img_dim, embed_size = 10, 64, 32

    images = jax.random.normal(kx, (B, img_dim), dtype=jnp.float32)

    # Xavier-uniform init like init_weights(); bias filled with 0.
    r = math.sqrt(6.0) / math.sqrt(img_dim + embed_size)
    weight = jax.random.uniform(
        kw, (embed_size, img_dim), dtype=jnp.float32, minval=-r, maxval=r
    )
    bias = jnp.zeros((embed_size,), dtype=jnp.float32)

    feats = encoder_image_precomp(images, weight, bias,
                                  no_imgnorm=False, use_abs=False)
    feats = jax.block_until_ready(feats)
    ref = _reference(images, weight, bias, no_imgnorm=False, use_abs=False)
    assert feats.shape == (B, embed_size)
    assert jnp.allclose(feats, ref, rtol=1e-5, atol=1e-5), (feats, ref)

    # Exercise the use_abs branch too.
    feats_abs = jax.block_until_ready(
        encoder_image_precomp(images, weight, bias, use_abs=True))
    ref_abs = _reference(images, weight, bias, use_abs=True)
    assert jnp.allclose(feats_abs, ref_abs, rtol=1e-5, atol=1e-5)

    print("KERNEL_OK")
</pallas_src>

<mosaic_0001>
module attributes {stable_mosaic.version = 11 : i64} {
  func.func @kernel(%arg0: i32, %arg1: memref<16x64xf32, #tpu.memory_space<vmem>>, %arg2: memref<64x32xf32, #tpu.memory_space<vmem>>, %arg3: memref<1x32xf32, #tpu.memory_space<vmem>>, %arg4: memref<16x32xf32, #tpu.memory_space<vmem>>) attributes {dimension_semantics = [#tpu.dimension_semantics<parallel>], iteration_bounds = array<i64: 1>, scalar_prefetch = 0 : i64, scratch_operands = 0 : i64, tpu.core_type = #tpu.core_type<tc>, window_params = [{transform_indices = @transform_0, window_bounds = array<i64: 16, 64>}, {pipeline_mode = #tpu.pipeline_mode<synchronous>, transform_indices = @transform_1, window_bounds = array<i64: 64, 32>}, {pipeline_mode = #tpu.pipeline_mode<synchronous>, transform_indices = @transform_2, window_bounds = array<i64: 1, 32>}, {transform_indices = @transform_3, window_bounds = array<i64: 16, 32>}]} {
    %c0 = arith.constant 0 : index
    %c0_0 = arith.constant 0 : index
    %0 = vector.load %arg1[%c0, %c0_0] : memref<16x64xf32, #tpu.memory_space<vmem>>, vector<16x64xf32>
    %c0_1 = arith.constant 0 : index
    %c0_2 = arith.constant 0 : index
    %1 = vector.load %arg2[%c0_1, %c0_2] : memref<64x32xf32, #tpu.memory_space<vmem>>, vector<64x32xf32>
    %cst = arith.constant dense<0.000000e+00> : vector<16x32xf32>
    %2 = tpu.matmul %0, %1, %cst {dimension_numbers = #tpu.dot_dimension_numbers<[1], [0], [0], [1], [0, 0, 1, 1], [], []>} : vector<16x64xf32>, vector<64x32xf32>, vector<16x32xf32> -> vector<16x32xf32>
    %c0_3 = arith.constant 0 : index
    %c0_4 = arith.constant 0 : index
    %3 = vector.load %arg3[%c0_3, %c0_4] : memref<1x32xf32, #tpu.memory_space<vmem>>, vector<1x32xf32>
    %4 = vector.broadcast %3 : vector<1x32xf32> to vector<16x32xf32>
    %5 = arith.addf %2, %4 : vector<16x32xf32>
    %6 = arith.mulf %5, %5 : vector<16x32xf32>
    %cst_5 = arith.constant dense<0.000000e+00> : vector<16xf32>
    %7 = vector.multi_reduction <add>, %6, %cst_5 [1] : vector<16x32xf32> to vector<16xf32>
    %8 = vector.shape_cast %7 : vector<16xf32> to vector<16x1xf32>
    %9 = math.rsqrt %8 : vector<16x1xf32>
    %10 = vector.broadcast %9 : vector<16x1xf32> to vector<16x32xf32>
    %11 = arith.mulf %5, %10 : vector<16x32xf32>
    %c0_6 = arith.constant 0 : index
    %c0_7 = arith.constant 0 : index
    %12 = vector.load %arg4[%c0_6, %c0_7] : memref<16x32xf32, #tpu.memory_space<vmem>>, vector<16x32xf32>
    tpu.vector_store %arg4[%c0_6, %c0_7], %11 {strides = array<i32>} : memref<16x32xf32, #tpu.memory_space<vmem>>, vector<16x32xf32>,
    return
  }
  func.func @transform_0(%arg0: i32) -> (i32, i32) {
    %c0_i32 = arith.constant 0 : i32
    %c0_i32_0 = arith.constant 0 : i32
    return %arg0, %c0_i32 : i32, i32
  }
  func.func @transform_1(%arg0: i32) -> (i32, i32) {
    %c0_i32 = arith.constant 0 : i32
    %c0_i32_0 = arith.constant 0 : i32
    %c0_i32_1 = arith.constant 0 : i32
    return %c0_i32, %c0_i32_0 : i32, i32
  }
  func.func @transform_2(%arg0: i32) -> (i32, i32) {
    %c0_i32 = arith.constant 0 : i32
    %c0_i32_0 = arith.constant 0 : i32
    %c0_i32_1 = arith.constant 0 : i32
    return %c0_i32, %c0_i32_0 : i32, i32
  }
  func.func @transform_3(%arg0: i32) -> (i32, i32) {
    %c0_i32 = arith.constant 0 : i32
    %c0_i32_0 = arith.constant 0 : i32
    return %arg0, %c0_i32 : i32, i32
  }
}

</mosaic_0001>

<llo_original>
// kernel: tpu_custom_call.1
$region0: #{tpu_custom_call.1}
  #allocation0 [shape = 'u32[]', space=smem, size = 0x4, offset = 0x4, fixed_abs, tag = 'smem constant byte address 0x4 - core index']
  #allocation1 [shape = 'u32[144,128]{1,0:T(1,128)}', space=vmem, size = 0x12000, scoped, tag = 'internal scratch']
  %s0 = inlined_call_operand.vmem [shape: f32[16,64], index: 0, kind: input, shape index: {}]
  %s1 = inlined_call_operand.vmem [shape: f32[64,32], index: 1, kind: input, shape index: {}]
  %s2 = inlined_call_operand.vmem [shape: f32[1,32], index: 2, kind: input, shape index: {}]
  %s3 = inlined_call_operand.hbm [shape: f32[16,32], index: 3, kind: output, shape index: {}]
  %s4 = sld [smem:[#allocation0]]
  $region22: #{tpu_custom_call.1} parent=0
    _
  %s6 = ssub.s32 1, %s4
  %s7 = scalar_select 0, %s6, %s4
  $region1: #{tpu_custom_call.1} parent=0
    #allocation2 [shape = 'u8[8192]{0}', space=vmem, size = 0x2000, scoped, tag = 'output window, operand 0, single buffered']
    #allocation3 [shape = 's32[1]{0}', space=sflag, size = 0x4, scoped, tag = 'scoped memory for tpu_custom_call.1']
    %8 = vsyncpa [#allocation3], 0
    // Predicated region
    $region2: #{tpu_custom_call.1} parent=1 // pred_check
      _
    $region3: #{tpu_custom_call.1} parent=1 // pred_check_branch
      %10 = sbr.rel (0) target = $region5
    $region4: #{tpu_custom_call.1} parent=1 // pred_region
      _
    $region5: #{tpu_custom_call.1} parent=1 // pred_fallthru
      _
    // Predicated region
    $region6: #{tpu_custom_call.1} parent=1 // pred_check
      _
    $region7: #{tpu_custom_call.1} parent=1 // pred_check_branch
      %12 = sbr.rel (0) target = $region9
    $region8: #{tpu_custom_call.1} parent=1 // pred_region
      _
    $region9: #{tpu_custom_call.1} parent=1 // pred_fallthru
      _
    // Predicated region
    $region10: #{tpu_custom_call.1} parent=1 // pred_check
      _
    $region11: #{tpu_custom_call.1} parent=1 // pred_check_branch
      %14 = sbr.rel (0) target = $region13
    $region12: #{tpu_custom_call.1} parent=1 // pred_region
      _
    $region13: #{tpu_custom_call.1} parent=1 // pred_fallthru
      _
    %v15 = vld [vmem:[%s0] sm:$0xff]
    %v16 = vld [vmem:[%s0 + $0x8] sm:$0xff]
    %v17 = vld [vmem:[%s1] sm:$0xff]
    %v18 = vld [vmem:[%s1 + $0x8] sm:$0xff]
    %v19 = vld [vmem:[%s1 + $0x10] sm:$0xff]
    %v20 = vld [vmem:[%s1 + $0x18] sm:$0xff]
    %v21 = vld [vmem:[%s1 + $0x20] sm:$0xff]
    %v22 = vld [vmem:[%s1 + $0x28] sm:$0xff]
    %v23 = vld [vmem:[%s1 + $0x30] sm:$0xff]
    %v24 = vld [vmem:[%s1 + $0x38] sm:$0xff]
    %v25 = vld [vmem:[%s2] sm:$0x1]
    %v27 = vlaneseq
    %v28 = vshrl.u32 %v27, 7
    %v29 = vsub.s32 0, %v28
    %v30 = vrot.slane %v25, %v29
    %vm32 = vcmask 523264
    %v34 = vsel %vm32, %v15, 0
    %v37 = vsel %vm32, %v16, 0
    %39 = vmatprep.subr.mxu0 0.0
    %40 = vmatpush1.msra.mxu0 %v17
    %41 = vmatprep.subr.mxu0 0.0
    %42 = vmatpush1.msra.mxu0 %v18
    %43 = vmatprep.subr.mxu0 0.0
    %44 = vmatpush1.msra.mxu0 %v19
    %45 = vmatprep.subr.mxu0 0.0
    %46 = vmatpush1.msra.mxu0 %v20
    %47 = vmatprep.subr.mxu0 0.0
    %48 = vmatpush1.msra.mxu0 %v21
    %49 = vmatprep.subr.mxu0 0.0
    %50 = vmatpush1.msra.mxu0 %v22
    %51 = vmatprep.subr.mxu0 0.0
    %52 = vmatpush1.msra.mxu0 %v23
    %53 = vmatprep.subr.mxu0 0.0
    %54 = vmatpush1.msra.mxu0 %v24
    %55 = vmatprep.subr.mxu0 0.0
    %56 = vmatpush1.msra.mxu0 0.0
    %57 = vmatprep.subr.mxu0 0.0
    %58 = vmatpush1.msra.mxu0 0.0
    %59 = vmatprep.subr.mxu0 0.0
    %60 = vmatpush1.msra.mxu0 0.0
    %61 = vmatprep.subr.mxu0 0.0
    %62 = vmatpush1.msra.mxu0 0.0
    %63 = vmatprep.subr.mxu0 0.0
    %64 = vmatpush1.msra.mxu0 0.0
    %65 = vmatprep.subr.mxu0 0.0
    %66 = vmatpush1.msra.mxu0 0.0
    %67 = vmatprep.subr.mxu0 0.0
    %68 = vmatpush1.msra.mxu0 0.0
    %69 = vmatprep.subr.mxu0 0.0
    %70 = vmatpush1.msra.mxu0 0.0
    %71 = vmatprep.subr.mxu0 0.0
    %72 = vmatpush1.msra.mxu0 0.0
    %73 = vmatprep.subr.mxu0 0.0
    %74 = vmatpush1.msra.mxu0 0.0
    %75 = vmatprep.subr.mxu0 0.0
    %76 = vmatpush1.msra.mxu0 0.0
    %77 = vmatprep.subr.mxu0 0.0
    %78 = vmatpush1.msra.mxu0 0.0
    %79 = vmatprep.subr.mxu0 0.0
    %80 = vmatpush1.msra.mxu0 0.0
    %81 = vmatprep.subr.mxu0 0.0
    %82 = vmatpush1.msra.mxu0 0.0
    %83 = vmatprep.subr.mxu0 0.0
    %84 = vmatpush1.msra.mxu0 0.0
    %85 = vmatprep.subr.mxu0 0.0
    %86 = vmatpush1.msra.mxu0 0.0
    %87 = vmatprep.subr.mxu0 0.0
    %88 = vmatpush1.msra.mxu0 0.0
    %89 = vmatprep.subr.mxu0 0.0
    %90 = vmatpush1.msra.mxu0 0.0
    %91 = vmatprep.subr.mxu0 0.0
    %92 = vmatpush1.msra.mxu0 0.0
    %93 = vmatprep.subr.mxu0 0.0
    %94 = vmatpush1.msra.mxu0 0.0
    %95 = vmatprep.subr.mxu0 0.0
    %96 = vmatpush1.msra.mxu0 0.0
    %97 = vmatprep.subr.mxu0 0.0
    %98 = vmatpush1.msra.mxu0 0.0
    %99 = vmatprep.subr.mxu0 0.0
    %100 = vmatpush1.msra.mxu0 0.0
    %101 = vmatprep.subr.mxu0 0.0
    %102 = vmatpush1.msra.mxu0 0.0
    %103 = vmatprep.mubr.f32.mxu0 0.0
    %104 = vmatmul.mubr.f32.gmra.mrb[0].mxu0 %v34
    %v105 = vpop.f32.mrb[0].mxu0
    %v106 = vadd.f32 %v30, %v105
    %v107 = vpop.f32.mrb[0].mxu0
    %108 = vmatprep.mubr.f32.mxu0 0.0
    %109 = vmatmul.mubr.f32.gmra.mrb[0].mxu0 %v37
    %v110 = vpop.f32.mrb[0].mxu0
    %v111 = vadd.f32 %v30, %v110
    %v112 = vpop.f32.mrb[0].mxu0
    %113 = vdwg.mxu0
    %v114 = vmul.f32 %v106, %v106
    %v115 = vmul.f32 %v111, %v111
    %vm116 = vcmask 261120
    %v117 = vsel %vm116, %v114, 0.0
    %118 = vadd.xlane.f32.xlu0 %v117
    %v119 = vpop.xlane.xlu0 %118
    %v120 = vsel %vm116, %v115, 0.0
    %121 = vadd.xlane.f32.xlu0 %v120
    %v122 = vpop.xlane.xlu0 %121
    %v123 = vrsqrt.pop %v119
    %v124 = vrsqrt.pop %v122
    %v125 = vmul.f32 %v106, %v123
    %v126 = vmul.f32 %v111, %v124
    %127 = vst.msk [vmem:[#allocation2] sm:$0xff] %vm116, %v125
    %128 = vst.msk [vmem:[#allocation2 + $0x8] sm:$0xff] %vm116, %v126
    // Predicated region
    $region14: #{tpu_custom_call.1} parent=1 // pred_check
      _
    $region15: #{tpu_custom_call.1} parent=1 // pred_check_branch
      %130 = sbr.rel (0) target = $region17
    $region16: #{tpu_custom_call.1} parent=1 // pred_region
      %s132 = ssub.s32 256, 256
      %133 = vsyncadd [#allocation3], %s132
      %s134 = sshll.u32 [#allocation2], 4
      %s135 = int_to_ptr.vmem [resolvable:$true] %s134
      %140 = dma.vmem_to_hbm [thread:$0]  %s135, 256, %s3, [#allocation3], 128, 128, 8
    $region17: #{tpu_custom_call.1} parent=1 // pred_fallthru
      _
    // Predicated region
    $region18: #{tpu_custom_call.1} parent=1 // pred_check
      _
    $region19: #{tpu_custom_call.1} parent=1 // pred_check_branch
      %142 = sbr.rel (0) target = $region21
    $region20: #{tpu_custom_call.1} parent=1 // pred_region
      %143 = dma.done [#allocation3], 256
    $region21: #{tpu_custom_call.1} parent=1 // pred_fallthru
      _
    %144 = vsyncpa [#allocation3], 1

</llo_original>
